<compile_context>
chip_gen: v7x
topology: tpu7x:2x2x1
jax: 0.10.0
libtpu: 0.0.40
codegen_flags: <defaults>
</compile_context>

<pallas_src>
import functools
import math

import jax
import jax.numpy as jnp
from jax.experimental import pallas as pl
from jax.experimental.pallas import tpu as pltpu


def _round_up(a: int, b: int) -> int:
    return (a + b - 1) // b * b


def _arc_margin_kernel(x_ref, w_ref, out_ref, *, s, cos_m, sin_m):
    """Compute one (tm, tn) tile of ArcFace logits.

    x_ref:   (tm, D) raw input rows (resident across the C grid axis).
    w_ref:   (tn, D) pre-normalized weight rows (streamed from HBM).
    out_ref: (tm, tn) output logits.
    """
    x = x_ref[...].astype(jnp.float32)

    # Row L2-normalization via rsqrt (EUP slot; avoids a VPU divide).
    # max(sumsq, 1e-24) mirrors F.normalize's max(||x||, 1e-12) clamp.
    sumsq = jnp.sum(x * x, axis=-1, keepdims=True)
    inv = jax.lax.rsqrt(jnp.maximum(sumsq, jnp.float32(1e-24)))
    x_n = x * inv

    w_n = w_ref[...]                      # already L2-normalized outside
    lhs = x_n.astype(w_n.dtype)           # bf16 MXU path if weights are bf16

    # cosine = x_n @ w_n.T  (contract over in_features) -> MXU, f32 accumulate
    c = jax.lax.dot_general(
        lhs, w_n,
        dimension_numbers=(((1,), (1,)), ((), ())),
        preferred_element_type=jnp.float32,
    )

    c = jnp.clip(c, jnp.float32(-1.0 + 1e-07), jnp.float32(1.0 - 1e-07))
    # s * cos(acos(c) + m) = s * (c*cos(m) - sqrt(1 - c^2)*sin(m))
    sin_theta = jnp.sqrt(jnp.maximum(1.0 - c * c, 0.0))
    out = jnp.float32(s) * (c * jnp.float32(cos_m) - sin_theta * jnp.float32(sin_m))
    out_ref[...] = out.astype(out_ref.dtype)


def arc_margin_product(x, weight, labels=None, *, s=64.0, m=0.5,
                       tm=None, tn=None, bf16_weights=False):
    """ArcFace forward.  x: [B, D], weight: [C, D]  ->  logits [B, C] (f32).

    `labels` is accepted for signature parity with the PyTorch module but, as
    in the reference forward, it is not used in the computation.
    `bf16_weights=True` streams the normalized weights in bf16 (≈2x less HBM
    traffic on the dominant stream; cosines lose a little precision).
    """
    del labels
    B, D = x.shape
    C, D2 = weight.shape
    assert D == D2, "in_features mismatch"

    # Pre-normalize W once outside the kernel: avoids recomputing per-row norms
    # for every batch tile inside the grid, and lets us optionally down-cast.
    w_n = weight.astype(jnp.float32)
    w_n = w_n / jnp.maximum(
        jnp.sqrt(jnp.sum(w_n * w_n, axis=-1, keepdims=True)), jnp.float32(1e-12))
    if bf16_weights:
        w_n = w_n.astype(jnp.bfloat16)

    # Tile sizes: sublane-aligned batch tiles, lane-dense (>=128) class tiles.
    if tm is None:
        tm = min(256, _round_up(B, 8))
    if tn is None:
        tn = min(512, _round_up(C, 128))

    Bp = _round_up(B, tm)
    Cp = _round_up(C, tn)
    x_p = x if Bp == B else jnp.pad(x, ((0, Bp - B), (0, 0)))
    w_p = w_n if Cp == C else jnp.pad(w_n, ((0, Cp - C), (0, 0)))

    # Grid: batch tiles outer, class tiles inner (fastest) -> x tile + its norm
    # stay resident per i while W streams.
    grid = (Bp // tm, Cp // tn)

    kernel = functools.partial(
        _arc_margin_kernel, s=float(s), cos_m=math.cos(m), sin_m=math.sin(m))

    w_bytes = 2 if bf16_weights else 4
    cost = pl.CostEstimate(
        flops=2 * Bp * Cp * D,
        transcendentals=Bp * Cp + Bp * (Cp // tn),
        bytes_accessed=Bp * D * 4 + Cp * D * w_bytes + Bp * Cp * 4,
    )

    out = pl.pallas_call(
        kernel,
        out_shape=jax.ShapeDtypeStruct((Bp, Cp), jnp.float32),
        grid=grid,
        in_specs=[
            pl.BlockSpec((tm, D), lambda i, j: (i, 0)),   # x: resident per i
            pl.BlockSpec((tn, D), lambda i, j: (j, 0)),   # W: streamed over j
        ],
        out_specs=pl.BlockSpec((tm, tn), lambda i, j: (i, j)),
        compiler_params=pltpu.CompilerParams(
            dimension_semantics=("parallel", "parallel"),
            vmem_limit_bytes=48 * 1024 * 1024,            # safe for v7x's 64 MiB
        ),
        cost_estimate=cost,
    )(x_p, w_p)

    if Bp != B or Cp != C:
        out = out[:B, :C]
    return out


if __name__ == "__main__":
    # Small, module-consistent shapes: batch=8, in_features=32, out_features=128.
    B, IN_FEATURES, OUT_FEATURES = 8, 32, 128
    S, M = 64.0, 0.5

    key = jax.random.PRNGKey(0)
    kx, kw, kl = jax.random.split(key, 3)

    x = jax.random.normal(kx, (B, IN_FEATURES), dtype=jnp.float32)
    # Mirrors nn.Parameter(torch.randn(out_features, in_features)).
    weight = jax.random.normal(kw, (OUT_FEATURES, IN_FEATURES), dtype=jnp.float32)
    labels = jax.random.randint(kl, (B,), 0, OUT_FEATURES)  # unused by forward

    logits = arc_margin_product(x, weight, labels, s=S, m=M)
    logits = jax.block_until_ready(logits)

    # Reference check in plain JAX (same math path as the PyTorch module).
    def ref(x, w):
        xn = x / jnp.maximum(jnp.linalg.norm(x, axis=-1, keepdims=True), 1e-12)
        wn = w / jnp.maximum(jnp.linalg.norm(w, axis=-1, keepdims=True), 1e-12)
        c = jnp.clip(xn @ wn.T, -1.0 + 1e-07, 1.0 - 1e-07)
        return S * jnp.cos(jnp.arccos(c) + M)

    expected = ref(x, weight)
    assert logits.shape == (B, OUT_FEATURES)
    assert jnp.allclose(logits, expected, atol=1e-3, rtol=1e-3), (
        float(jnp.max(jnp.abs(logits - expected)))
    )
    print("KERNEL_OK")
</pallas_src>

<mosaic_0001>
module attributes {stable_mosaic.version = 11 : i64} {
  func.func @_arc_margin_kernel(%arg0: i32, %arg1: i32, %arg2: memref<8x32xf32, #tpu.memory_space<vmem>>, %arg3: memref<128x32xf32, #tpu.memory_space<vmem>>, %arg4: memref<8x128xf32, #tpu.memory_space<vmem>>) attributes {dimension_semantics = [#tpu.dimension_semantics<parallel>, #tpu.dimension_semantics<parallel>], iteration_bounds = array<i64: 1, 1>, scalar_prefetch = 0 : i64, scratch_operands = 0 : i64, tpu.core_type = #tpu.core_type<tc>, window_params = [{transform_indices = @transform_0, window_bounds = array<i64: 8, 32>}, {transform_indices = @transform_1, window_bounds = array<i64: 128, 32>}, {transform_indices = @transform_2, window_bounds = array<i64: 8, 128>}]} {
    %c0 = arith.constant 0 : index
    %c0_0 = arith.constant 0 : index
    %0 = vector.load %arg2[%c0, %c0_0] : memref<8x32xf32, #tpu.memory_space<vmem>>, vector<8x32xf32>
    %1 = arith.mulf %0, %0 : vector<8x32xf32>
    %cst = arith.constant dense<0.000000e+00> : vector<8xf32>
    %2 = vector.multi_reduction <add>, %1, %cst [1] : vector<8x32xf32> to vector<8xf32>
    %3 = vector.shape_cast %2 : vector<8xf32> to vector<8x1xf32>
    %cst_1 = arith.constant 1.000000e-24 : f32
    %4 = vector.broadcast %cst_1 : f32 to vector<8x1xf32>
    %5 = arith.maximumf %3, %4 : vector<8x1xf32>
    %6 = math.rsqrt %5 : vector<8x1xf32>
    %7 = vector.broadcast %6 : vector<8x1xf32> to vector<8x32xf32>
    %8 = arith.mulf %0, %7 : vector<8x32xf32>
    %c0_2 = arith.constant 0 : index
    %c0_3 = arith.constant 0 : index
    %9 = vector.load %arg3[%c0_2, %c0_3] : memref<128x32xf32, #tpu.memory_space<vmem>>, vector<128x32xf32>
    %cst_4 = arith.constant dense<0.000000e+00> : vector<8x128xf32>
    %10 = tpu.matmul %8, %9, %cst_4 {dimension_numbers = #tpu.dot_dimension_numbers<[1], [1], [0], [0], [0, 0, 1, 0], [], []>} : vector<8x32xf32>, vector<128x32xf32>, vector<8x128xf32> -> vector<8x128xf32>
    %cst_5 = arith.constant -0.99999988 : f32
    %cst_6 = arith.constant 0.99999988 : f32
    %11 = vector.broadcast %cst_5 : f32 to vector<8x128xf32>
    %12 = arith.maximumf %11, %10 : vector<8x128xf32>
    %13 = vector.broadcast %cst_6 : f32 to vector<8x128xf32>
    %14 = arith.minimumf %13, %12 : vector<8x128xf32>
    %15 = arith.mulf %14, %14 : vector<8x128xf32>
    %cst_7 = arith.constant 1.000000e+00 : f32
    %16 = vector.broadcast %cst_7 : f32 to vector<8x128xf32>
    %17 = arith.subf %16, %15 : vector<8x128xf32>
    %cst_8 = arith.constant 0.000000e+00 : f32
    %18 = vector.broadcast %cst_8 : f32 to vector<8x128xf32>
    %19 = arith.maximumf %17, %18 : vector<8x128xf32>
    %20 = math.sqrt %19 : vector<8x128xf32>
    %cst_9 = arith.constant 0.87758255 : f32
    %21 = vector.broadcast %cst_9 : f32 to vector<8x128xf32>
    %22 = arith.mulf %14, %21 : vector<8x128xf32>
    %cst_10 = arith.constant 0.47942555 : f32
    %23 = vector.broadcast %cst_10 : f32 to vector<8x128xf32>
    %24 = arith.mulf %20, %23 : vector<8x128xf32>
    %25 = arith.subf %22, %24 : vector<8x128xf32>
    %cst_11 = arith.constant 6.400000e+01 : f32
    %26 = vector.broadcast %cst_11 : f32 to vector<8x128xf32>
    %27 = arith.mulf %26, %25 : vector<8x128xf32>
    %c0_12 = arith.constant 0 : index
    %c0_13 = arith.constant 0 : index
    %28 = vector.load %arg4[%c0_12, %c0_13] : memref<8x128xf32, #tpu.memory_space<vmem>>, vector<8x128xf32>
    tpu.vector_store %arg4[%c0_12, %c0_13], %27 {strides = array<i32>} : memref<8x128xf32, #tpu.memory_space<vmem>>, vector<8x128xf32>,
    return
  }
  func.func @transform_0(%arg0: i32, %arg1: i32) -> (i32, i32) {
    %c0_i32 = arith.constant 0 : i32
    %c0_i32_0 = arith.constant 0 : i32
    return %arg0, %c0_i32 : i32, i32
  }
  func.func @transform_1(%arg0: i32, %arg1: i32) -> (i32, i32) {
    %c0_i32 = arith.constant 0 : i32
    %c0_i32_0 = arith.constant 0 : i32
    return %arg1, %c0_i32 : i32, i32
  }
  func.func @transform_2(%arg0: i32, %arg1: i32) -> (i32, i32) {
    %c0_i32 = arith.constant 0 : i32
    return %arg0, %arg1 : i32, i32
  }
}

</mosaic_0001>

<llo_original>
// kernel: tpu_custom_call.1
$region0: #{tpu_custom_call.1}
  #allocation0 [shape = 'u32[]', space=smem, size = 0x4, offset = 0x4, fixed_abs, tag = 'smem constant byte address 0x4 - core index']
  #allocation1 [shape = 'u32[144,128]{1,0:T(1,128)}', space=vmem, size = 0x12000, scoped, tag = 'internal scratch']
  %s0 = inlined_call_operand.vmem [shape: f32[8,32], index: 0, kind: input, shape index: {}]
  %s1 = inlined_call_operand.vmem [shape: f32[128,32], index: 1, kind: input, shape index: {}]
  %s2 = inlined_call_operand.hbm [shape: f32[8,128], index: 2, kind: output, shape index: {}]
  %s3 = sld [smem:[#allocation0]]
  $region18: #{tpu_custom_call.1} parent=0
    _
  %s5 = ssub.s32 1, %s3
  %s6 = scalar_select 0, %s5, %s3
  $region1: #{tpu_custom_call.1} parent=0
    #allocation2 [shape = 'u8[4096]{0}', space=vmem, size = 0x1000, scoped, tag = 'output window, operand 0, single buffered']
    #allocation3 [shape = 's32[1]{0}', space=sflag, size = 0x4, scoped, tag = 'scoped memory for tpu_custom_call.1']
    %7 = vsyncpa [#allocation3], 0
    // Predicated region
    $region2: #{tpu_custom_call.1} parent=1 // pred_check
      _
    $region3: #{tpu_custom_call.1} parent=1 // pred_check_branch
      %9 = sbr.rel (0) target = $region5
    $region4: #{tpu_custom_call.1} parent=1 // pred_region
      _
    $region5: #{tpu_custom_call.1} parent=1 // pred_fallthru
      _
    // Predicated region
    $region6: #{tpu_custom_call.1} parent=1 // pred_check
      _
    $region7: #{tpu_custom_call.1} parent=1 // pred_check_branch
      %11 = sbr.rel (0) target = $region9
    $region8: #{tpu_custom_call.1} parent=1 // pred_region
      _
    $region9: #{tpu_custom_call.1} parent=1 // pred_fallthru
      _
    %v12 = vld [vmem:[%s0] sm:$0xff]
    %v13 = vmul.f32 %v12, %v12
    %vm14 = vcmask 261120
    %v15 = vsel %vm14, %v13, 0.0
    %16 = vadd.xlane.f32.xlu0 %v15
    %v17 = vpop.xlane.xlu0 %16
    %v18 = vmax.f32 %v17, 1e-24
    %v19 = vrsqrt.pop %v18
    %v20 = vmul.f32 %v12, %v19
    %v21 = vld [vmem:[%s1] sm:$0xff]
    %v22 = vld [vmem:[%s1 + $0x8] sm:$0xff]
    %v23 = vld [vmem:[%s1 + $0x10] sm:$0xff]
    %v24 = vld [vmem:[%s1 + $0x18] sm:$0xff]
    %v25 = vld [vmem:[%s1 + $0x20] sm:$0xff]
    %v26 = vld [vmem:[%s1 + $0x28] sm:$0xff]
    %v27 = vld [vmem:[%s1 + $0x30] sm:$0xff]
    %v28 = vld [vmem:[%s1 + $0x38] sm:$0xff]
    %v29 = vld [vmem:[%s1 + $0x40] sm:$0xff]
    %v30 = vld [vmem:[%s1 + $0x48] sm:$0xff]
    %v31 = vld [vmem:[%s1 + $0x50] sm:$0xff]
    %v32 = vld [vmem:[%s1 + $0x58] sm:$0xff]
    %v33 = vld [vmem:[%s1 + $0x60] sm:$0xff]
    %v34 = vld [vmem:[%s1 + $0x68] sm:$0xff]
    %v35 = vld [vmem:[%s1 + $0x70] sm:$0xff]
    %v36 = vld [vmem:[%s1 + $0x78] sm:$0xff]
    %v38 = vsel %vm14, %v20, 0
    %v41 = vsel %vm14, %v21, 0
    %v44 = vsel %vm14, %v22, 0
    %v47 = vsel %vm14, %v23, 0
    %v50 = vsel %vm14, %v24, 0
    %v53 = vsel %vm14, %v25, 0
    %v56 = vsel %vm14, %v26, 0
    %v59 = vsel %vm14, %v27, 0
    %v62 = vsel %vm14, %v28, 0
    %v65 = vsel %vm14, %v29, 0
    %v68 = vsel %vm14, %v30, 0
    %v71 = vsel %vm14, %v31, 0
    %v74 = vsel %vm14, %v32, 0
    %v77 = vsel %vm14, %v33, 0
    %v80 = vsel %vm14, %v34, 0
    %v83 = vsel %vm14, %v35, 0
    %v86 = vsel %vm14, %v36, 0
    %88 = vmatprep.subr.mxu0 0.0
    %89 = vmatpush1.xpose.msra.mxu0 %v41
    %90 = vmatprep.subr.mxu0 0.0
    %91 = vmatpush1.xpose.msra.mxu0 %v44
    %92 = vmatprep.subr.mxu0 0.0
    %93 = vmatpush1.xpose.msra.mxu0 %v47
    %94 = vmatprep.subr.mxu0 0.0
    %95 = vmatpush1.xpose.msra.mxu0 %v50
    %96 = vmatprep.subr.mxu0 0.0
    %97 = vmatpush1.xpose.msra.mxu0 %v53
    %98 = vmatprep.subr.mxu0 0.0
    %99 = vmatpush1.xpose.msra.mxu0 %v56
    %100 = vmatprep.subr.mxu0 0.0
    %101 = vmatpush1.xpose.msra.mxu0 %v59
    %102 = vmatprep.subr.mxu0 0.0
    %103 = vmatpush1.xpose.msra.mxu0 %v62
    %104 = vmatprep.subr.mxu0 0.0
    %105 = vmatpush1.xpose.msra.mxu0 %v65
    %106 = vmatprep.subr.mxu0 0.0
    %107 = vmatpush1.xpose.msra.mxu0 %v68
    %108 = vmatprep.subr.mxu0 0.0
    %109 = vmatpush1.xpose.msra.mxu0 %v71
    %110 = vmatprep.subr.mxu0 0.0
    %111 = vmatpush1.xpose.msra.mxu0 %v74
    %112 = vmatprep.subr.mxu0 0.0
    %113 = vmatpush1.xpose.msra.mxu0 %v77
    %114 = vmatprep.subr.mxu0 0.0
    %115 = vmatpush1.xpose.msra.mxu0 %v80
    %116 = vmatprep.subr.mxu0 0.0
    %117 = vmatpush1.xpose.msra.mxu0 %v83
    %118 = vmatprep.subr.mxu0 0.0
    %119 = vmatpush1.xpose.msra.mxu0 %v86
    %120 = vmatprep.subr.mxu0 0.0
    %121 = vmatpush1.xpose.msra.mxu0 0.0
    %122 = vmatprep.subr.mxu0 0.0
    %123 = vmatpush1.xpose.msra.mxu0 0.0
    %124 = vmatprep.subr.mxu0 0.0
    %125 = vmatpush1.xpose.msra.mxu0 0.0
    %126 = vmatprep.subr.mxu0 0.0
    %127 = vmatpush1.xpose.msra.mxu0 0.0
    %128 = vmatprep.subr.mxu0 0.0
    %129 = vmatpush1.xpose.msra.mxu0 0.0
    %130 = vmatprep.subr.mxu0 0.0
    %131 = vmatpush1.xpose.msra.mxu0 0.0
    %132 = vmatprep.subr.mxu0 0.0
    %133 = vmatpush1.xpose.msra.mxu0 0.0
    %134 = vmatprep.subr.mxu0 0.0
    %135 = vmatpush1.xpose.msra.mxu0 0.0
    %136 = vmatprep.subr.mxu0 0.0
    %137 = vmatpush1.xpose.msra.mxu0 0.0
    %138 = vmatprep.subr.mxu0 0.0
    %139 = vmatpush1.xpose.msra.mxu0 0.0
    %140 = vmatprep.subr.mxu0 0.0
    %141 = vmatpush1.xpose.msra.mxu0 0.0
    %142 = vmatprep.subr.mxu0 0.0
    %143 = vmatpush1.xpose.msra.mxu0 0.0
    %144 = vmatprep.subr.mxu0 0.0
    %145 = vmatpush1.xpose.msra.mxu0 0.0
    %146 = vmatprep.subr.mxu0 0.0
    %147 = vmatpush1.xpose.msra.mxu0 0.0
    %148 = vmatprep.subr.mxu0 0.0
    %149 = vmatpush1.xpose.msra.mxu0 0.0
    %150 = vmatprep.subr.mxu0 0.0
    %151 = vmatpush1.xpose.msra.mxu0 0.0
    %152 = vmatprep.mubr.f32.mxu0 0.0
    %153 = vmatmul.mubr.f32.gmra.mrb[0].mxu0 %v38
    %v154 = vpop.f32.mrb[0].mxu0
    %v155 = vadd.f32 0.0, %v154
    %v156 = vpop.f32.mrb[0].mxu0
    %157 = vdwg.mxu0
    %v158 = vmax.f32 %v155, -0.9999999
    %v159 = vmin.f32 %v158, 0.9999999
    %v160 = vmul.f32 %v159, %v159
    %v161 = vsub.f32 1.0, %v160
    %v162 = vmax.f32 %v161, 0.0
    %v163 = vrsqrt.pop %v162
    %v164 = vmul.f32 %v162, %v163
    %vm165 = vcmp.eq.f32.partialorder %v162, inf
    %v166 = vsel %vm165, %v162, %v164
    %vm167 = vcmp.eq.f32.partialorder %v162, 0.0
    %v168 = vand.u32 %v162, 2147483648
    %v169 = vsel %vm167, %v168, %v166
    %v170 = vmul.f32 %v159, 0.87758255
    %v171 = vmul.f32 %v169, 0.47942555
    %v172 = vsub.f32 %v170, %v171
    %v173 = vmul.f32 %v172, 64.0
    %174 = vst [vmem:[#allocation2] sm:$0xff] %v173
    // Predicated region
    $region10: #{tpu_custom_call.1} parent=1 // pred_check
      _
    $region11: #{tpu_custom_call.1} parent=1 // pred_check_branch
      %176 = sbr.rel (0) target = $region13
    $region12: #{tpu_custom_call.1} parent=1 // pred_region
      %s178 = ssub.s32 128, 128
      %179 = vsyncadd [#allocation3], %s178
      %s181 = sshll.u32 [#allocation2], 4
      %s182 = int_to_ptr.vmem [resolvable:$true] %s181
      %184 = dma.vmem_to_hbm [thread:$0]  %s182, 128, %s2, [#allocation3]
    $region13: #{tpu_custom_call.1} parent=1 // pred_fallthru
      _
    // Predicated region
    $region14: #{tpu_custom_call.1} parent=1 // pred_check
      _
    $region15: #{tpu_custom_call.1} parent=1 // pred_check_branch
      %186 = sbr.rel (0) target = $region17
    $region16: #{tpu_custom_call.1} parent=1 // pred_region
      %187 = dma.done [#allocation3], 128
    $region17: #{tpu_custom_call.1} parent=1 // pred_fallthru
      _
    %188 = vsyncpa [#allocation3], 1

</llo_original>
